<compile_context>
chip_gen: v7x
topology: tpu7x:2x2x1
jax: 0.10.0
libtpu: 0.0.40
codegen_flags: <defaults>
</compile_context>

<pallas_src>
import jax
import jax.numpy as jnp
from jax.experimental import pallas as pl
from jax.experimental.pallas import tpu as pltpu

_LANES = 128
_SUBLANES = 8
# (2048, 128) f32 block = 1 MiB per buffer; in+out double-buffered = 4 MiB.
_MAX_BLOCK_ROWS = 2048


def _identity_kernel(x_ref, o_ref):
    # dropout(p, train=False) == identity (no rescaling).
    o_ref[...] = x_ref[...]


def dropout_eval(x1: jax.Array) -> jax.Array:
    """Equivalent of Model.forward: dropout(x1, p=0.6, train=False) == x1."""
    orig_shape = x1.shape
    n = x1.size
    x_flat = x1.reshape(-1)

    # Lane-dense 2-D view: (rows, 128), rows padded to a multiple of the
    # block height (itself a multiple of 8 sublanes).
    rows_needed = pl.cdiv(n, _LANES)
    if rows_needed <= _MAX_BLOCK_ROWS:
        block_rows = max(_SUBLANES, ((rows_needed + _SUBLANES - 1) // _SUBLANES) * _SUBLANES)
    else:
        block_rows = _MAX_BLOCK_ROWS
    rows = ((rows_needed + block_rows - 1) // block_rows) * block_rows
    padded_n = rows * _LANES
    if padded_n != n:
        x_flat = jnp.pad(x_flat, (0, padded_n - n))
    x2d = x_flat.reshape(rows, _LANES)

    out2d = pl.pallas_call(
        _identity_kernel,
        out_shape=jax.ShapeDtypeStruct((rows, _LANES), x1.dtype),
        grid=(rows // block_rows,),
        in_specs=[pl.BlockSpec((block_rows, _LANES), lambda i: (i, 0))],
        out_specs=pl.BlockSpec((block_rows, _LANES), lambda i: (i, 0)),
        input_output_aliases={0: 0},  # output aliases input -> no extra HBM stream
        compiler_params=pltpu.CompilerParams(
            dimension_semantics=("parallel",)  # lets v7x shard across both TCs
        ),
    )(x2d)

    return out2d.reshape(-1)[:n].reshape(orig_shape)


if __name__ == "__main__":
    key = jax.random.PRNGKey(0)
    # 16 elements: consistent with the module's (1, 4, 4) reshape branch.
    x1 = jax.random.normal(key, (16,), dtype=jnp.float32)

    out = dropout_eval(x1)
    jax.block_until_ready(out)

    # Eval-mode dropout is an exact identity: verify bit-exact match.
    assert out.shape == x1.shape
    assert jnp.array_equal(out, x1)

    print("KERNEL_OK")
</pallas_src>

<mosaic_0001>
module attributes {stable_mosaic.version = 11 : i64} {
  func.func @_identity_kernel(%arg0: i32, %arg1: memref<8x128xf32, #tpu.memory_space<vmem>>, %arg2: memref<8x128xf32, #tpu.memory_space<vmem>>) attributes {dimension_semantics = [#tpu.dimension_semantics<parallel>], iteration_bounds = array<i64: 1>, scalar_prefetch = 0 : i64, scratch_operands = 0 : i64, tpu.core_type = #tpu.core_type<tc>, window_params = [{transform_indices = @transform_0, window_bounds = array<i64: 8, 128>}, {transform_indices = @transform_1, window_bounds = array<i64: 8, 128>}]} {
    %c0 = arith.constant 0 : index
    %c0_0 = arith.constant 0 : index
    %0 = vector.load %arg1[%c0, %c0_0] : memref<8x128xf32, #tpu.memory_space<vmem>>, vector<8x128xf32>
    %c0_1 = arith.constant 0 : index
    %c0_2 = arith.constant 0 : index
    %1 = vector.load %arg2[%c0_1, %c0_2] : memref<8x128xf32, #tpu.memory_space<vmem>>, vector<8x128xf32>
    tpu.vector_store %arg2[%c0_1, %c0_2], %0 {strides = array<i32>} : memref<8x128xf32, #tpu.memory_space<vmem>>, vector<8x128xf32>,
    return
  }
  func.func @transform_0(%arg0: i32) -> (i32, i32) {
    %c0_i32 = arith.constant 0 : i32
    %c0_i32_0 = arith.constant 0 : i32
    return %arg0, %c0_i32 : i32, i32
  }
  func.func @transform_1(%arg0: i32) -> (i32, i32) {
    %c0_i32 = arith.constant 0 : i32
    %c0_i32_0 = arith.constant 0 : i32
    return %arg0, %c0_i32 : i32, i32
  }
}

</mosaic_0001>

<llo_original>
// kernel: tpu_custom_call.1
$region0: #{tpu_custom_call.1}
  #allocation0 [shape = 'u32[]', space=smem, size = 0x4, offset = 0x4, fixed_abs, tag = 'smem constant byte address 0x4 - core index']
  #allocation1 [shape = 'u32[144,128]{1,0:T(1,128)}', space=vmem, size = 0x12000, scoped, tag = 'internal scratch']
  %s0 = inlined_call_operand.hbm [shape: f32[8,128], index: 0, kind: input, shape index: {}, may-alias: {0,1}]
  %s1 = inlined_call_operand.hbm [shape: f32[8,128], index: 1, kind: output, shape index: {}, may-alias: {0,1}]
  %s2 = sld [smem:[#allocation0]]
  $region18: #{tpu_custom_call.1} parent=0
    _
  %s4 = ssub.s32 1, %s2
  %s5 = scalar_select 0, %s4, %s2
  $region1: #{tpu_custom_call.1} parent=0
    #allocation2 [shape = 'u8[4096]{0}', space=vmem, size = 0x1000, scoped, tag = 'input window, operand 0, single buffered']
    #allocation3 [shape = 's32[1]{0}', space=sflag, size = 0x4, scoped, tag = 'scoped memory for tpu_custom_call.1']
    #allocation4 [shape = 's32[1]{0}', space=sflag, size = 0x4, scoped, tag = 'scoped memory for tpu_custom_call.1']
    #allocation5 [shape = 'u8[4096]{0}', space=vmem, size = 0x1000, scoped, tag = 'output window, operand 0, single buffered']
    %6 = vsyncpa [#allocation3], 0
    %7 = vsyncpa [#allocation4], 0
    // Predicated region
    $region2: #{tpu_custom_call.1} parent=1 // pred_check
      _
    $region3: #{tpu_custom_call.1} parent=1 // pred_check_branch
      %9 = sbr.rel (0) target = $region5
    $region4: #{tpu_custom_call.1} parent=1 // pred_region
      %s11 = ssub.s32 128, 128
      %12 = vsyncadd [#allocation3], %s11
      %s14 = sshll.u32 [#allocation2], 4
      %s15 = int_to_ptr.vmem [resolvable:$true] %s14
      %17 = dma.hbm_to_vmem [thread:$0]  %s0, 128, %s15, [#allocation3]
    $region5: #{tpu_custom_call.1} parent=1 // pred_fallthru
      _
    // Predicated region
    $region6: #{tpu_custom_call.1} parent=1 // pred_check
      _
    $region7: #{tpu_custom_call.1} parent=1 // pred_check_branch
      %19 = sbr.rel (0) target = $region9
    $region8: #{tpu_custom_call.1} parent=1 // pred_region
      %20 = dma.done [#allocation3], 128
    $region9: #{tpu_custom_call.1} parent=1 // pred_fallthru
      _
    %v21 = vld [vmem:[#allocation2] sm:$0xff]
    %22 = vst [vmem:[#allocation5] sm:$0xff] %v21
    // Predicated region
    $region10: #{tpu_custom_call.1} parent=1 // pred_check
      _
    $region11: #{tpu_custom_call.1} parent=1 // pred_check_branch
      %24 = sbr.rel (0) target = $region13
    $region12: #{tpu_custom_call.1} parent=1 // pred_region
      %s26 = ssub.s32 128, 128
      %27 = vsyncadd [#allocation4], %s26
      %s29 = sshll.u32 [#allocation5], 4
      %s30 = int_to_ptr.vmem [resolvable:$true] %s29
      %32 = dma.vmem_to_hbm [thread:$0]  %s30, 128, %s1, [#allocation4]
    $region13: #{tpu_custom_call.1} parent=1 // pred_fallthru
      _
    // Predicated region
    $region14: #{tpu_custom_call.1} parent=1 // pred_check
      _
    $region15: #{tpu_custom_call.1} parent=1 // pred_check_branch
      %34 = sbr.rel (0) target = $region17
    $region16: #{tpu_custom_call.1} parent=1 // pred_region
      %35 = dma.done [#allocation4], 128
    $region17: #{tpu_custom_call.1} parent=1 // pred_fallthru
      _
    %36 = vsyncpa [#allocation3], 1
    %37 = vsyncpa [#allocation4], 1

</llo_original>
